<compile_context>
chip_gen: v7x
topology: tpu7x:2x2x1
jax: 0.10.0
libtpu: 0.0.40
codegen_flags: <defaults>
</compile_context>

<pallas_src>
import numpy as np
import jax
import jax.numpy as jnp
from jax.experimental import pallas as pl
from jax.experimental.pallas import tpu as pltpu

_LANES = 512                 # multiple of 128 -> unmasked, lane-dense vst
_MAX_BLOCK_ROWS = 1024       # 1024 x 512 x 4 B = 2 MiB per f32 operand per buffer
_PALLAS_MIN_ELEMS = 1 << 20  # below this, a fused XLA elementwise is faster


def _param_loss_kernel(p_ref, g_ref, v_ref, o_ref):
    # Pure VPU work: cast on-chip (inputs stream in native dtype), abs/sub/mul
    # in f32, store in the promoted output dtype.
    p = p_ref[...].astype(jnp.float32)
    g = g_ref[...].astype(jnp.float32)
    v = v_ref[...].astype(jnp.float32)
    o_ref[...] = (jnp.abs(p - g) * v).astype(o_ref.dtype)


def _cdiv(a, b):
    return -(-a // b)


def param_loss(param_out, param_gt, valid, *, force_pallas=False):
    """loss = |param_out - param_gt| * valid  (elementwise, `valid` broadcast).

    Returns an array of param_out.shape in the promoted dtype of the inputs.
    """
    param_out = jnp.asarray(param_out)
    param_gt = jnp.asarray(param_gt)
    valid = jnp.asarray(valid)

    out_dtype = jnp.result_type(param_out.dtype, param_gt.dtype, valid.dtype)
    if not jnp.issubdtype(valid.dtype, jnp.floating):
        valid = valid.astype(out_dtype)          # avoid bool/int refs in VMEM

    orig_shape = param_out.shape
    if valid.shape != orig_shape:
        # TODO(synk): per-sample masks could stay compact (own BlockSpec +
        # in-kernel broadcast) instead of being materialized to full size here.
        valid = jnp.broadcast_to(valid, orig_shape)

    n = int(np.prod(orig_shape)) if len(orig_shape) > 0 else 1

    # Tiny problems: let XLA fuse abs/sub/mul; a pallas_call launch dominates.
    if not force_pallas and n < _PALLAS_MIN_ELEMS:
        return (jnp.abs(param_out.astype(jnp.float32) -
                        param_gt.astype(jnp.float32)) *
                valid.astype(jnp.float32)).astype(out_dtype)

    # ---- view everything as one lane-dense (rows, 512) slab -----------------
    if n % _LANES == 0:
        rows, pad = n // _LANES, 0               # pure reshape: no HBM copy
    else:
        rows = _cdiv(n, _LANES)                  # ragged tail -> pad fallback
        pad = rows * _LANES - n

    def to_slab(x):
        flat = x.reshape(-1)
        if pad:
            flat = jnp.pad(flat, (0, pad))       # zero pad -> padded loss is 0
        return flat.reshape(rows, _LANES)

    p2, g2, v2 = to_slab(param_out), to_slab(param_gt), to_slab(valid)

    if rows <= _MAX_BLOCK_ROWS:
        block_rows = rows                        # single grid step
    else:
        block_rows = _MAX_BLOCK_ROWS             # >= 2 steps -> both v7x TCs busy
    grid = (_cdiv(rows, block_rows),)            # boundary block is masked by Pallas

    spec = pl.BlockSpec((block_rows, _LANES), lambda i: (i, 0))

    out = pl.pallas_call(
        _param_loss_kernel,
        out_shape=jax.ShapeDtypeStruct((rows, _LANES), out_dtype),
        grid=grid,
        in_specs=[spec, spec, spec],
        out_specs=spec,
        compiler_params=pltpu.CompilerParams(
            dimension_semantics=("parallel",),
            vmem_limit_bytes=32 * 1024 * 1024,   # headroom on v5e; fine on v6e/v7x
        ),
    )(p2, g2, v2)

    flat = out.reshape(-1)
    if pad:
        flat = flat[:n]
    return flat.reshape(orig_shape)


if __name__ == "__main__":
    key = jax.random.PRNGKey(0)
    k1, k2, k3 = jax.random.split(key, 3)

    # Small shape consistent with ParamLoss usage (per-sample parameter vector).
    B, D = 2, 72
    param_out = jax.random.normal(k1, (B, D), dtype=jnp.float32)
    param_gt = jax.random.normal(k2, (B, D), dtype=jnp.float32)
    valid = (jax.random.uniform(k3, (B, D)) > 0.3).astype(jnp.float32)

    loss = param_loss(param_out, param_gt, valid, force_pallas=True)
    jax.block_until_ready(loss)
    ref = jnp.abs(param_out - param_gt) * valid
    assert loss.shape == ref.shape, (loss.shape, ref.shape)
    np.testing.assert_allclose(np.asarray(loss), np.asarray(ref),
                               rtol=1e-6, atol=1e-6)

    # Extra check: 512-aligned slab (zero-copy path, no pad/slice), multi-step
    # grid with a partial boundary block (rows=1536 -> grid=(2,)), and a
    # per-sample mask that exercises the broadcast path.
    k4, k5, k6 = jax.random.split(k3, 3)
    po2 = jax.random.normal(k4, (2048, 384), dtype=jnp.float32)
    pg2 = jax.random.normal(k5, (2048, 384), dtype=jnp.float32)
    vl2 = (jax.random.uniform(k6, (2048, 1)) > 0.5).astype(jnp.float32)
    loss2 = param_loss(po2, pg2, vl2, force_pallas=True)
    jax.block_until_ready(loss2)
    ref2 = jnp.abs(po2 - pg2) * vl2
    np.testing.assert_allclose(np.asarray(loss2), np.asarray(ref2),
                               rtol=1e-6, atol=1e-6)

    print("KERNEL_OK")
</pallas_src>

<mosaic_0001>
module attributes {stable_mosaic.version = 11 : i64} {
  func.func @_param_loss_kernel(%arg0: i32, %arg1: memref<1x512xf32, #tpu.memory_space<vmem>>, %arg2: memref<1x512xf32, #tpu.memory_space<vmem>>, %arg3: memref<1x512xf32, #tpu.memory_space<vmem>>, %arg4: memref<1x512xf32, #tpu.memory_space<vmem>>) attributes {dimension_semantics = [#tpu.dimension_semantics<parallel>], iteration_bounds = array<i64: 1>, scalar_prefetch = 0 : i64, scratch_operands = 0 : i64, tpu.core_type = #tpu.core_type<tc>, window_params = [{transform_indices = @transform_0, window_bounds = array<i64: 1, 512>}, {transform_indices = @transform_1, window_bounds = array<i64: 1, 512>}, {transform_indices = @transform_2, window_bounds = array<i64: 1, 512>}, {transform_indices = @transform_3, window_bounds = array<i64: 1, 512>}]} {
    %c0 = arith.constant 0 : index
    %c0_0 = arith.constant 0 : index
    %0 = vector.load %arg1[%c0, %c0_0] : memref<1x512xf32, #tpu.memory_space<vmem>>, vector<1x512xf32>
    %c0_1 = arith.constant 0 : index
    %c0_2 = arith.constant 0 : index
    %1 = vector.load %arg2[%c0_1, %c0_2] : memref<1x512xf32, #tpu.memory_space<vmem>>, vector<1x512xf32>
    %c0_3 = arith.constant 0 : index
    %c0_4 = arith.constant 0 : index
    %2 = vector.load %arg3[%c0_3, %c0_4] : memref<1x512xf32, #tpu.memory_space<vmem>>, vector<1x512xf32>
    %3 = arith.subf %0, %1 : vector<1x512xf32>
    %4 = math.absf %3 : vector<1x512xf32>
    %5 = arith.mulf %4, %2 : vector<1x512xf32>
    %c0_5 = arith.constant 0 : index
    %c0_6 = arith.constant 0 : index
    %6 = vector.load %arg4[%c0_5, %c0_6] : memref<1x512xf32, #tpu.memory_space<vmem>>, vector<1x512xf32>
    tpu.vector_store %arg4[%c0_5, %c0_6], %5 {strides = array<i32>} : memref<1x512xf32, #tpu.memory_space<vmem>>, vector<1x512xf32>,
    return
  }
  func.func @transform_0(%arg0: i32) -> (i32, i32) {
    %c0_i32 = arith.constant 0 : i32
    %c0_i32_0 = arith.constant 0 : i32
    return %arg0, %c0_i32 : i32, i32
  }
  func.func @transform_1(%arg0: i32) -> (i32, i32) {
    %c0_i32 = arith.constant 0 : i32
    %c0_i32_0 = arith.constant 0 : i32
    return %arg0, %c0_i32 : i32, i32
  }
  func.func @transform_2(%arg0: i32) -> (i32, i32) {
    %c0_i32 = arith.constant 0 : i32
    %c0_i32_0 = arith.constant 0 : i32
    return %arg0, %c0_i32 : i32, i32
  }
  func.func @transform_3(%arg0: i32) -> (i32, i32) {
    %c0_i32 = arith.constant 0 : i32
    %c0_i32_0 = arith.constant 0 : i32
    return %arg0, %c0_i32 : i32, i32
  }
}

</mosaic_0001>

<llo_original>
// kernel: tpu_custom_call.1
$region0: #{tpu_custom_call.1}
  #allocation0 [shape = 'u32[]', space=smem, size = 0x4, offset = 0x4, fixed_abs, tag = 'smem constant byte address 0x4 - core index']
  #allocation1 [shape = 'u32[144,128]{1,0:T(1,128)}', space=vmem, size = 0x12000, scoped, tag = 'internal scratch']
  %s0 = inlined_call_operand.hbm [shape: f32[1,512], index: 0, kind: input, shape index: {}]
  %s1 = inlined_call_operand.hbm [shape: f32[1,512], index: 1, kind: input, shape index: {}]
  %s2 = inlined_call_operand.vmem [shape: f32[1,512], index: 2, kind: input, shape index: {}]
  %s3 = inlined_call_operand.hbm [shape: f32[1,512], index: 3, kind: output, shape index: {}]
  %s4 = sld [smem:[#allocation0]]
  $region30: #{tpu_custom_call.1} parent=0
    _
  %s6 = ssub.s32 1, %s4
  %s7 = scalar_select 0, %s6, %s4
  $region1: #{tpu_custom_call.1} parent=0
    #allocation2 [shape = 'u8[2048]{0}', space=vmem, size = 0x800, scoped, tag = 'input window, operand 0, single buffered']
    #allocation3 [shape = 's32[1]{0}', space=sflag, size = 0x4, scoped, tag = 'scoped memory for tpu_custom_call.1']
    #allocation4 [shape = 's32[1]{0}', space=sflag, size = 0x4, scoped, tag = 'scoped memory for tpu_custom_call.1']
    #allocation5 [shape = 'u8[2048]{0}', space=vmem, size = 0x800, scoped, tag = 'input window, operand 1, single buffered']
    #allocation6 [shape = 's32[1]{0}', space=sflag, size = 0x4, scoped, tag = 'scoped memory for tpu_custom_call.1']
    #allocation7 [shape = 'u8[2048]{0}', space=vmem, size = 0x800, scoped, tag = 'output window, operand 0, single buffered']
    %8 = vsyncpa [#allocation3], 0
    %9 = vsyncpa [#allocation6], 0
    %10 = vsyncpa [#allocation4], 0
    // Predicated region
    $region2: #{tpu_custom_call.1} parent=1 // pred_check
      _
    $region3: #{tpu_custom_call.1} parent=1 // pred_check_branch
      %12 = sbr.rel (0) target = $region5
    $region4: #{tpu_custom_call.1} parent=1 // pred_region
      %s14 = ssub.s32 64, 64
      %15 = vsyncadd [#allocation3], %s14
      %s17 = sshll.u32 [#allocation2], 4
      %s18 = int_to_ptr.vmem [resolvable:$true] %s17
      %20 = dma.hbm_to_vmem [thread:$0]  %s0, 64, %s18, [#allocation3]
    $region5: #{tpu_custom_call.1} parent=1 // pred_fallthru
      _
    // Predicated region
    $region6: #{tpu_custom_call.1} parent=1 // pred_check
      _
    $region7: #{tpu_custom_call.1} parent=1 // pred_check_branch
      %22 = sbr.rel (0) target = $region9
    $region8: #{tpu_custom_call.1} parent=1 // pred_region
      %s24 = ssub.s32 64, 64
      %25 = vsyncadd [#allocation6], %s24
      %s27 = sshll.u32 [#allocation5], 4
      %s28 = int_to_ptr.vmem [resolvable:$true] %s27
      %30 = dma.hbm_to_vmem [thread:$0]  %s1, 64, %s28, [#allocation6]
    $region9: #{tpu_custom_call.1} parent=1 // pred_fallthru
      _
    // Predicated region
    $region10: #{tpu_custom_call.1} parent=1 // pred_check
      _
    $region11: #{tpu_custom_call.1} parent=1 // pred_check_branch
      %32 = sbr.rel (0) target = $region13
    $region12: #{tpu_custom_call.1} parent=1 // pred_region
      _
    $region13: #{tpu_custom_call.1} parent=1 // pred_fallthru
      _
    // Predicated region
    $region14: #{tpu_custom_call.1} parent=1 // pred_check
      _
    $region15: #{tpu_custom_call.1} parent=1 // pred_check_branch
      %34 = sbr.rel (0) target = $region17
    $region16: #{tpu_custom_call.1} parent=1 // pred_region
      %35 = dma.done [#allocation3], 64
    $region17: #{tpu_custom_call.1} parent=1 // pred_fallthru
      _
    // Predicated region
    $region18: #{tpu_custom_call.1} parent=1 // pred_check
      _
    $region19: #{tpu_custom_call.1} parent=1 // pred_check_branch
      %37 = sbr.rel (0) target = $region21
    $region20: #{tpu_custom_call.1} parent=1 // pred_region
      %38 = dma.done [#allocation6], 64
    $region21: #{tpu_custom_call.1} parent=1 // pred_fallthru
      _
    %v39 = vld [vmem:[#allocation2] sm:$0xf]
    %v40 = vld [vmem:[#allocation5] sm:$0xf]
    %v41 = vld [vmem:[%s2] sm:$0xf]
    %v42 = vsub.f32 %v39, %v40
    %v43 = vand.u32 2147483647, %v42
    %v44 = vmul.f32 %v43, %v41
    %v45 = vlaneseq
    %vm46 = vcmp.ge.s32.totalorder %v45, 0
    %vm47 = vcmp.lt.s32.totalorder %v45, 512
    %vm48 = vmand %vm46, %vm47
    %49 = vst.msk [vmem:[#allocation7] sm:$0xf] %vm48, %v44
    // Predicated region
    $region22: #{tpu_custom_call.1} parent=1 // pred_check
      _
    $region23: #{tpu_custom_call.1} parent=1 // pred_check_branch
      %51 = sbr.rel (0) target = $region25
    $region24: #{tpu_custom_call.1} parent=1 // pred_region
      %s53 = ssub.s32 64, 64
      %54 = vsyncadd [#allocation4], %s53
      %s56 = sshll.u32 [#allocation7], 4
      %s57 = int_to_ptr.vmem [resolvable:$true] %s56
      %59 = dma.vmem_to_hbm [thread:$0]  %s57, 64, %s3, [#allocation4]
    $region25: #{tpu_custom_call.1} parent=1 // pred_fallthru
      _
    // Predicated region
    $region26: #{tpu_custom_call.1} parent=1 // pred_check
      _
    $region27: #{tpu_custom_call.1} parent=1 // pred_check_branch
      %61 = sbr.rel (0) target = $region29
    $region28: #{tpu_custom_call.1} parent=1 // pred_region
      %62 = dma.done [#allocation4], 64
    $region29: #{tpu_custom_call.1} parent=1 // pred_fallthru
      _
    %63 = vsyncpa [#allocation3], 1
    %64 = vsyncpa [#allocation6], 1
    %65 = vsyncpa [#allocation4], 1

</llo_original>
